<compile_context>
chip_gen: v5e
topology: v5e:2x2
jax: 0.10.0
libtpu: 0.0.40
codegen_flags: <defaults>
</compile_context>

<pallas_src>
import functools
import math

import jax
import jax.numpy as jnp
from jax import lax
from jax.experimental import pallas as pl
from jax.experimental.pallas import tpu as pltpu


def _attention_kernel(q_ref, k_ref, v_ref, mask_ref, ctx_ref, w_ref, *, scale):
    """One (batch, q-tile) step: score -> mask -> softmax -> context.

    Kernel-visible block shapes (batch dim squeezed):
      q_ref (tq, D), k_ref (Lk, D), v_ref (Lk, Dv),
      mask_ref (tq, Lk), ctx_ref (tq, Dv), w_ref (tq, Lk)
    """
    q = q_ref[...]                         # (tq, D), input dtype
    if scale != 1.0:
        q = q * scale                      # fold scale into Q (O(tq*D))
    k = k_ref[...]                         # (Lk, D)
    v = v_ref[...]                         # (Lk, Dv)

    # score = (Q*scale) @ K^T : contract last dims of both operands directly on
    # the MXU (no explicit transpose), accumulate in f32.
    score = lax.dot_general(
        q, k,
        dimension_numbers=(((1,), (1,)), ((), ())),
        preferred_element_type=jnp.float32,
    )                                      # (tq, Lk) f32

    # score += -1e9 * (1 - mask)  — identical additive semantics, one select.
    bias = jnp.where(mask_ref[...] != 0, 0.0, -1000000000.0)
    score = score + bias

    # Numerically stable softmax along the key axis (f32).
    m = jnp.max(score, axis=-1, keepdims=True)
    e = jnp.exp(score - m)
    denom = jnp.sum(e, axis=-1, keepdims=True)
    weights = e * pl.reciprocal(denom, approx=True)   # EUP reciprocal

    # context = weights @ V  (MXU), operands in V's dtype, f32 accumulation.
    ctx = jnp.dot(weights.astype(v.dtype), v, preferred_element_type=jnp.float32)

    w_ref[...] = weights.astype(w_ref.dtype)
    ctx_ref[...] = ctx.astype(ctx_ref.dtype)


def _choose_q_tile(lq):
    """Largest Lq tile that divides Lq, is <= 512, and keeps (8,128) tiling."""
    if lq <= 512:
        return lq
    for t in (512, 384, 256, 128, 64, 32, 16, 8):
        if lq % t == 0:
            return t
    return lq  # ragged Lq: fall back to one block (full dim always legal)


def attention_forward(query, key, value, mask, *, use_scale=True):
    """Pallas equivalent of Attention.forward(query, key, value, mask).

    Returns (context_vector, attention_weights), matching the PyTorch module.
    `mask` may be any dtype (nonzero == attend); pass bf16/int8 to minimize the
    O(B*Lq*Lk) HBM mask stream.
    """
    B, Lq, D = query.shape
    _, Lk, Dk = key.shape
    _, _, Dv = value.shape
    assert D == Dk
    hidden_size = D
    scale = (1.0 / math.sqrt(hidden_size)) if use_scale else 1.0

    tq = _choose_q_tile(Lq)
    assert Lq % tq == 0
    n_q_tiles = Lq // tq

    kernel = functools.partial(_attention_kernel, scale=scale)

    sq = pl.Squeezed()
    grid_spec = pltpu.PrefetchScalarGridSpec(
        num_scalar_prefetch=0,
        grid=(B, n_q_tiles),
        in_specs=[
            pl.BlockSpec((sq, tq, D), lambda b, i: (b, i, 0)),    # query tile
            pl.BlockSpec((sq, Lk, D), lambda b, i: (b, 0, 0)),    # full K
            pl.BlockSpec((sq, Lk, Dv), lambda b, i: (b, 0, 0)),   # full V
            pl.BlockSpec((sq, tq, Lk), lambda b, i: (b, i, 0)),   # mask tile
        ],
        out_specs=[
            pl.BlockSpec((sq, tq, Dv), lambda b, i: (b, i, 0)),   # context
            pl.BlockSpec((sq, tq, Lk), lambda b, i: (b, i, 0)),   # weights
        ],
    )

    ctx, weights = pl.pallas_call(
        kernel,
        grid_spec=grid_spec,
        out_shape=(
            jax.ShapeDtypeStruct((B, Lq, Dv), query.dtype),
            jax.ShapeDtypeStruct((B, Lq, Lk), query.dtype),
        ),
        compiler_params=pltpu.CompilerParams(
            dimension_semantics=("parallel", "parallel"),
        ),
    )(query, key, value, mask)
    return ctx, weights


def attention_reference(query, key, value, mask, *, use_scale=True):
    """Pure-JAX reference mirroring the PyTorch forward."""
    hidden_size = query.shape[-1]
    scale = (1.0 / math.sqrt(hidden_size)) if use_scale else 1.0
    score = jnp.einsum(
        "bqd,bkd->bqk",
        query.astype(jnp.float32), key.astype(jnp.float32)) * scale
    score = score + (-1000000000.0) * (1.0 - mask.astype(jnp.float32))
    weights = jax.nn.softmax(score, axis=-1)
    ctx = jnp.einsum("bqk,bkd->bqd", weights, value.astype(jnp.float32))
    return ctx.astype(query.dtype), weights.astype(query.dtype)


if __name__ == "__main__":
    # Small shapes consistent with the module's forward signature.
    B, Lq, Lk, D = 2, 8, 8, 32
    key_rng = jax.random.PRNGKey(0)
    k1, k2, k3, k4 = jax.random.split(key_rng, 4)

    query = jax.random.normal(k1, (B, Lq, D), dtype=jnp.float32)
    key = jax.random.normal(k2, (B, Lk, D), dtype=jnp.float32)
    value = jax.random.normal(k3, (B, Lk, D), dtype=jnp.float32)
    # Binary mask (nonzero = attend, 0 = masked). Compact dtype to halve the
    # mask HBM stream; {0,1} is exact in bf16 so semantics are unchanged.
    mask = (jax.random.uniform(k4, (B, Lq, Lk)) > 0.2).astype(jnp.bfloat16)
    # Ensure every query row attends to at least one key (avoid fully-masked rows).
    mask = mask.at[:, :, 0].set(1.0)

    ctx, weights = attention_forward(query, key, value, mask, use_scale=True)
    ctx = jax.block_until_ready(ctx)
    weights = jax.block_until_ready(weights)

    ctx_ref, w_ref = attention_reference(query, key, value, mask, use_scale=True)

    assert ctx.shape == (B, Lq, D)
    assert weights.shape == (B, Lq, Lk)
    # Tolerance covers the EUP approximate reciprocal in the softmax normalize.
    assert jnp.allclose(ctx, ctx_ref, atol=2e-3, rtol=2e-3)
    assert jnp.allclose(weights, w_ref, atol=2e-3, rtol=2e-3)

    print("KERNEL_OK")
</pallas_src>

<mosaic_0001>
module attributes {stable_mosaic.version = 11 : i64} {
  func.func @_attention_kernel(%arg0: i32, %arg1: i32, %arg2: memref<1x8x32xf32, #tpu.memory_space<vmem>>, %arg3: memref<1x8x32xf32, #tpu.memory_space<vmem>>, %arg4: memref<1x8x32xf32, #tpu.memory_space<vmem>>, %arg5: memref<1x8x8xbf16, #tpu.memory_space<vmem>>, %arg6: memref<1x8x32xf32, #tpu.memory_space<vmem>>, %arg7: memref<1x8x8xf32, #tpu.memory_space<vmem>>) attributes {dimension_semantics = [#tpu.dimension_semantics<parallel>, #tpu.dimension_semantics<parallel>], iteration_bounds = array<i64: 2, 1>, scalar_prefetch = 0 : i64, scratch_operands = 0 : i64, tpu.core_type = #tpu.core_type<tc>, window_params = [{transform_indices = @transform_0, window_bounds = array<i64: 1, 8, 32>}, {transform_indices = @transform_1, window_bounds = array<i64: 1, 8, 32>}, {transform_indices = @transform_2, window_bounds = array<i64: 1, 8, 32>}, {transform_indices = @transform_3, window_bounds = array<i64: 1, 8, 8>}, {transform_indices = @transform_4, window_bounds = array<i64: 1, 8, 32>}, {transform_indices = @transform_5, window_bounds = array<i64: 1, 8, 8>}]} {
    %c0 = arith.constant 0 : index
    %c0_0 = arith.constant 0 : index
    %c0_1 = arith.constant 0 : index
    %0 = vector.load %arg2[%c0, %c0_0, %c0_1] : memref<1x8x32xf32, #tpu.memory_space<vmem>>, vector<1x8x32xf32>
    %1 = vector.shape_cast %0 : vector<1x8x32xf32> to vector<8x32xf32>
    %cst = arith.constant 0.176776692 : f32
    %2 = vector.broadcast %cst : f32 to vector<8x32xf32>
    %3 = arith.mulf %1, %2 : vector<8x32xf32>
    %c0_2 = arith.constant 0 : index
    %c0_3 = arith.constant 0 : index
    %c0_4 = arith.constant 0 : index
    %4 = vector.load %arg3[%c0_2, %c0_3, %c0_4] : memref<1x8x32xf32, #tpu.memory_space<vmem>>, vector<1x8x32xf32>
    %5 = vector.shape_cast %4 : vector<1x8x32xf32> to vector<8x32xf32>
    %c0_5 = arith.constant 0 : index
    %c0_6 = arith.constant 0 : index
    %c0_7 = arith.constant 0 : index
    %6 = vector.load %arg4[%c0_5, %c0_6, %c0_7] : memref<1x8x32xf32, #tpu.memory_space<vmem>>, vector<1x8x32xf32>
    %7 = vector.shape_cast %6 : vector<1x8x32xf32> to vector<8x32xf32>
    %cst_8 = arith.constant dense<0.000000e+00> : vector<8x8xf32>
    %8 = tpu.matmul %3, %5, %cst_8 {dimension_numbers = #tpu.dot_dimension_numbers<[1], [1], [0], [0], [0, 0, 1, 0], [], []>} : vector<8x32xf32>, vector<8x32xf32>, vector<8x8xf32> -> vector<8x8xf32>
    %c0_9 = arith.constant 0 : index
    %c0_10 = arith.constant 0 : index
    %c0_11 = arith.constant 0 : index
    %9 = vector.load %arg5[%c0_9, %c0_10, %c0_11] : memref<1x8x8xbf16, #tpu.memory_space<vmem>>, vector<1x8x8xbf16>
    %10 = vector.shape_cast %9 : vector<1x8x8xbf16> to vector<8x8xbf16>
    %cst_12 = arith.constant 0.000000e+00 : bf16
    %11 = vector.broadcast %cst_12 : bf16 to vector<8x8xbf16>
    %12 = arith.cmpf one, %10, %11 : vector<8x8xbf16>
    %cst_13 = arith.constant 0.000000e+00 : f32
    %cst_14 = arith.constant -1.000000e+09 : f32
    %13 = vector.broadcast %cst_13 : f32 to vector<8x8xf32>
    %14 = vector.broadcast %cst_14 : f32 to vector<8x8xf32>
    %15 = arith.select %12, %13, %14 : vector<8x8xi1>, vector<8x8xf32>
    %16 = arith.addf %8, %15 : vector<8x8xf32>
    %cst_15 = arith.constant dense<0xFF800000> : vector<8xf32>
    %17 = vector.multi_reduction <maximumf>, %16, %cst_15 [1] : vector<8x8xf32> to vector<8xf32>
    %18 = vector.shape_cast %17 : vector<8xf32> to vector<8x1xf32>
    %19 = vector.broadcast %18 : vector<8x1xf32> to vector<8x8xf32>
    %20 = arith.subf %16, %19 : vector<8x8xf32>
    %21 = math.exp %20 : vector<8x8xf32>
    %cst_16 = arith.constant dense<0.000000e+00> : vector<8xf32>
    %22 = vector.multi_reduction <add>, %21, %cst_16 [1] : vector<8x8xf32> to vector<8xf32>
    %23 = vector.shape_cast %22 : vector<8xf32> to vector<8x1xf32>
    %24 = tpu.reciprocal %23 {approx = true} : vector<8x1xf32> -> vector<8x1xf32>
    %25 = vector.broadcast %24 : vector<8x1xf32> to vector<8x8xf32>
    %26 = arith.mulf %21, %25 : vector<8x8xf32>
    %cst_17 = arith.constant dense<0.000000e+00> : vector<8x32xf32>
    %27 = tpu.matmul %26, %7, %cst_17 {dimension_numbers = #tpu.dot_dimension_numbers<[1], [0], [0], [1], [0, 0, 1, 1], [], []>} : vector<8x8xf32>, vector<8x32xf32>, vector<8x32xf32> -> vector<8x32xf32>
    %c0_18 = arith.constant 0 : index
    %c0_19 = arith.constant 0 : index
    %c0_20 = arith.constant 0 : index
    %28 = vector.load %arg7[%c0_18, %c0_19, %c0_20] : memref<1x8x8xf32, #tpu.memory_space<vmem>>, vector<1x8x8xf32>
    %29 = vector.shape_cast %28 : vector<1x8x8xf32> to vector<8x8xf32>
    %30 = vector.shape_cast %26 : vector<8x8xf32> to vector<1x8x8xf32>
    tpu.vector_store %arg7[%c0_18, %c0_19, %c0_20], %30 {strides = array<i32>} : memref<1x8x8xf32, #tpu.memory_space<vmem>>, vector<1x8x8xf32>,
    %c0_21 = arith.constant 0 : index
    %c0_22 = arith.constant 0 : index
    %c0_23 = arith.constant 0 : index
    %31 = vector.load %arg6[%c0_21, %c0_22, %c0_23] : memref<1x8x32xf32, #tpu.memory_space<vmem>>, vector<1x8x32xf32>
    %32 = vector.shape_cast %31 : vector<1x8x32xf32> to vector<8x32xf32>
    %33 = vector.shape_cast %27 : vector<8x32xf32> to vector<1x8x32xf32>
    tpu.vector_store %arg6[%c0_21, %c0_22, %c0_23], %33 {strides = array<i32>} : memref<1x8x32xf32, #tpu.memory_space<vmem>>, vector<1x8x32xf32>,
    return
  }
  func.func @transform_0(%arg0: i32, %arg1: i32) -> (i32, i32, i32) {
    %c0_i32 = arith.constant 0 : i32
    %c0_i32_0 = arith.constant 0 : i32
    return %arg0, %arg1, %c0_i32 : i32, i32, i32
  }
  func.func @transform_1(%arg0: i32, %arg1: i32) -> (i32, i32, i32) {
    %c0_i32 = arith.constant 0 : i32
    %c0_i32_0 = arith.constant 0 : i32
    %c0_i32_1 = arith.constant 0 : i32
    return %arg0, %c0_i32, %c0_i32_0 : i32, i32, i32
  }
  func.func @transform_2(%arg0: i32, %arg1: i32) -> (i32, i32, i32) {
    %c0_i32 = arith.constant 0 : i32
    %c0_i32_0 = arith.constant 0 : i32
    %c0_i32_1 = arith.constant 0 : i32
    return %arg0, %c0_i32, %c0_i32_0 : i32, i32, i32
  }
  func.func @transform_3(%arg0: i32, %arg1: i32) -> (i32, i32, i32) {
    %c0_i32 = arith.constant 0 : i32
    %c0_i32_0 = arith.constant 0 : i32
    return %arg0, %arg1, %c0_i32 : i32, i32, i32
  }
  func.func @transform_4(%arg0: i32, %arg1: i32) -> (i32, i32, i32) {
    %c0_i32 = arith.constant 0 : i32
    %c0_i32_0 = arith.constant 0 : i32
    return %arg0, %arg1, %c0_i32 : i32, i32, i32
  }
  func.func @transform_5(%arg0: i32, %arg1: i32) -> (i32, i32, i32) {
    %c0_i32 = arith.constant 0 : i32
    %c0_i32_0 = arith.constant 0 : i32
    return %arg0, %arg1, %c0_i32 : i32, i32, i32
  }
}

</mosaic_0001>

<llo_original>
// kernel: tpu_custom_call.1
$region0: #{tpu_custom_call.1}
  #allocation0 [shape = 'u32[]', space=smem, size = 0x4, offset = 0x4, fixed_abs, tag = 'smem constant byte address 0x4 - core index']
  #allocation1 [shape = 'u32[72,128]{1,0:T(1,128)}', space=vmem, size = 0x9000, scoped, tag = 'internal scratch']
  %s0 = inlined_call_operand.hbm [shape: f32[2,8,32], index: 0, kind: input, shape index: {}]
  %s1 = inlined_call_operand.hbm [shape: f32[2,8,32], index: 1, kind: input, shape index: {}]
  %s2 = inlined_call_operand.hbm [shape: f32[2,8,32], index: 2, kind: input, shape index: {}]
  %s3 = inlined_call_operand.hbm [shape: bf16[2,8,8], index: 3, kind: input, shape index: {}]
  %s4 = inlined_call_operand.hbm [shape: f32[2,8,32], index: 4, kind: output, shape index: {0}]
  %s5 = inlined_call_operand.hbm [shape: f32[2,8,8], index: 5, kind: output, shape index: {1}]
  %6 = xla_tuple %s4, %s5
  %s7 = sld [smem:[#allocation0]]
  $region73: #{tpu_custom_call.1} parent=0
    _
  %s9 = ssub.s32 1, %s7
  %s10 = scalar_select 0, %s9, %s7
  $region1: #{tpu_custom_call.1} parent=0
    #allocation2 [shape = 'u8[8192]{0}', space=vmem, size = 0x2000, scoped, tag = 'input window, operand 0']
    #allocation3 [shape = 's32[2]{0}', space=sflag, size = 0x8, scoped, tag = 'scoped memory for tpu_custom_call.1']
    #allocation4 [shape = 's32[2]{0}', space=sflag, size = 0x8, scoped, tag = 'scoped memory for tpu_custom_call.1']
    #allocation5 [shape = 'u8[8192]{0}', space=vmem, size = 0x2000, scoped, tag = 'input window, operand 1']
    #allocation6 [shape = 's32[2]{0}', space=sflag, size = 0x8, scoped, tag = 'scoped memory for tpu_custom_call.1']
    #allocation7 [shape = 'u8[8192]{0}', space=vmem, size = 0x2000, scoped, tag = 'input window, operand 2']
    #allocation8 [shape = 'u8[4096]{0}', space=vmem, size = 0x1000, scoped, tag = 'input window, operand 3']
    #allocation9 [shape = 's32[2]{0}', space=sflag, size = 0x8, scoped, tag = 'scoped memory for tpu_custom_call.1']
    #allocation10 [shape = 'u8[8192]{0}', space=vmem, size = 0x2000, scoped, tag = 'output window, operand 0']
    #allocation11 [shape = 'u8[8192]{0}', space=vmem, size = 0x2000, scoped, tag = 'output window, operand 1']
    #allocation12 [shape = 's32[2]{0}', space=sflag, size = 0x8, scoped, tag = 'scoped memory for tpu_custom_call.1']
    %11 = vsyncpa [#allocation3], 0
    %s12 = scalar_lea.sflag [#allocation3], 1
    %13 = vsyncpa %s12, 0
    %14 = vsyncpa [#allocation6], 0
    %s15 = scalar_lea.sflag [#allocation6], 1
    %16 = vsyncpa %s15, 0
    %17 = vsyncpa [#allocation9], 0
    %s18 = scalar_lea.sflag [#allocation9], 1
    %19 = vsyncpa %s18, 0
    %20 = vsyncpa [#allocation4], 0
    %s21 = scalar_lea.sflag [#allocation4], 1
    %22 = vsyncpa %s21, 0
    %23 = vsyncpa [#allocation12], 0
    %s24 = scalar_lea.sflag [#allocation12], 1
    %25 = vsyncpa %s24, 0
    loop: start=0, step=1, limit=4
    $region2: #{tpu_custom_call.1} parent=1 // loop_pre_header
      _
    $region3: #{tpu_custom_call.1} parent=1 // loop_header
      %s27 = sphi 0, %s31
      %p28 = scmp.ge.s32.totalorder %s27, 4
      %s34 = sphi 0, %s46
      %s35 = sphi 0, %s42
      %s36 = sphi 0, %s34
      %s37 = sphi 0, %s35
      %s38 = sphi 0, %s36
      %s39 = sphi 0, %s37
      %s51 = sphi 0, %s53
      %s54 = sphi 0, %s51
      %s55 = sphi 0, %s54
      %s71 = sphi 0, %s55
      %s77 = sphi 0, %s79
      %s80 = sphi 0, %s77
      %s81 = sphi 0, %s80
      %s97 = sphi 0, %s81
      %s103 = sphi 0, %s105
      %s106 = sphi 0, %s103
      %s107 = sphi 0, %s106
      %s123 = sphi 0, %s107
      %s131 = sphi 0, %s133
      %s134 = sphi 0, %s131
      %s135 = sphi 0, %s134
      %s151 = sphi 0, %s135
      %s159 = sphi 0, %s161
      %s162 = sphi 0, %s159
      %s163 = sphi 0, %s162
      %s179 = sphi 0, %s163
      %s187 = sphi 0, %s189
      %s190 = sphi 0, %s187
      %s191 = sphi 0, %s190
      %s207 = sphi 0, %s191
    $region4: #{tpu_custom_call.1} parent=1 // loop_header_branch
      %30 = sbr.rel (%p28) target = $region8
    $region5: #{tpu_custom_call.1} parent=1 // loop_body
      %s32 = ssub.s32 %s27, 1
      %s33 = ssub.s32 %s27, 2
      %s40 = sadd.s32 1, %s35
      %p41 = scmp.ge.s32.totalorder %s40, 1
      %s42 = scalar_select %p41, 0, %s40
      %s43 = sadd.s32 1, %s34
      %s44 = scalar_select %p41, %s43, %s34
      %p45 = scmp.ge.s32.totalorder %s44, 2
      %s46 = scalar_select %p45, 0, %s44
      %s47 = ssub.s32 %s34, %s46
      %s48 = ssub.s32 %s35, %s42
      %s49 = sor.u32 %s47, %s48
      %p50 = scmp.eq.s32.totalorder %s49, 0
      %s52 = sadd.s32 %s51, 1
      %s53 = scalar_select %p50, %s51, %s52
      %p56 = pneg %p50
      %p57 = scmp.eq.s32.totalorder %s27, 1
      %p58 = por %p56, %p57
      %p59 = scmp.ne.s32.totalorder %s51, %s54
      %p60 = scmp.eq.s32.totalorder %s27, 0
      %p61 = por %p59, %p60
      %p62 = scmp.ne.s32.totalorder %s51, %s54
      %p63 = scmp.eq.s32.totalorder %s32, 1
      %p64 = por %p62, %p63
      %p65 = scmp.ne.s32.totalorder %s54, %s55
      %p66 = scmp.eq.s32.totalorder %s32, 0
      %p67 = por %p65, %p66
      %p68 = scmp.ne.s32.totalorder %s54, %s55
      %p69 = scmp.eq.s32.totalorder %s33, 1
      %p70 = por %p68, %p69
      %p72 = scmp.ne.s32.totalorder %s55, %s71
      %p73 = scmp.eq.s32.totalorder %s33, 0
      %p74 = por %p72, %p73
      %s75 = ssub.s32 %s34, %s46
      %p76 = scmp.eq.s32.totalorder %s75, 0
      %s78 = sadd.s32 %s77, 1
      %s79 = scalar_select %p76, %s77, %s78
      %p82 = pneg %p76
      %p83 = scmp.eq.s32.totalorder %s27, 1
      %p84 = por %p82, %p83
      %p85 = scmp.ne.s32.totalorder %s77, %s80
      %p86 = scmp.eq.s32.totalorder %s27, 0
      %p87 = por %p85, %p86
      %p88 = scmp.ne.s32.totalorder %s77, %s80
      %p89 = scmp.eq.s32.totalorder %s32, 1
      %p90 = por %p88, %p89
      %p91 = scmp.ne.s32.totalorder %s80, %s81
      %p92 = scmp.eq.s32.totalorder %s32, 0
      %p93 = por %p91, %p92
      %p94 = scmp.ne.s32.totalorder %s80, %s81
      %p95 = scmp.eq.s32.totalorder %s33, 1
      %p96 = por %p94, %p95
      %p98 = scmp.ne.s32.totalorder %s81, %s97
      %p99 = scmp.eq.s32.totalorder %s33, 0
      %p100 = por %p98, %p99
      %s101 = ssub.s32 %s34, %s46
      %p102 = scmp.eq.s32.totalorder %s101, 0
      %s104 = sadd.s32 %s103, 1
      %s105 = scalar_select %p102, %s103, %s104
      %p108 = pneg %p102
      %p109 = scmp.eq.s32.totalorder %s27, 1
      %p110 = por %p108, %p109
      %p111 = scmp.ne.s32.totalorder %s103, %s106
      %p112 = scmp.eq.s32.totalorder %s27, 0
      %p113 = por %p111, %p112
      %p114 = scmp.ne.s32.totalorder %s103, %s106
      %p115 = scmp.eq.s32.totalorder %s32, 1
      %p116 = por %p114, %p115
      %p117 = scmp.ne.s32.totalorder %s106, %s107
      %p118 = scmp.eq.s32.totalorder %s32, 0
      %p119 = por %p117, %p118
      %p120 = scmp.ne.s32.totalorder %s106, %s107
      %p121 = scmp.eq.s32.totalorder %s33, 1
      %p122 = por %p120, %p121
      %p124 = scmp.ne.s32.totalorder %s107, %s123
      %p125 = scmp.eq.s32.totalorder %s33, 0
      %p126 = por %p124, %p125
      %s127 = ssub.s32 %s34, %s46
      %s128 = ssub.s32 %s35, %s42
      %s129 = sor.u32 %s127, %s128
      %p130 = scmp.eq.s32.totalorder %s129, 0
      %s132 = sadd.s32 %s131, 1
      %s133 = scalar_select %p130, %s131, %s132
      %p136 = pneg %p130
      %p137 = scmp.eq.s32.totalorder %s27, 1
      %p138 = por %p136, %p137
      %p139 = scmp.ne.s32.totalorder %s131, %s134
      %p140 = scmp.eq.s32.totalorder %s27, 0
      %p141 = por %p139, %p140
      %p142 = scmp.ne.s32.totalorder %s131, %s134
      %p143 = scmp.eq.s32.totalorder %s32, 1
      %p144 = por %p142, %p143
      %p145 = scmp.ne.s32.totalorder %s134, %s135
      %p146 = scmp.eq.s32.totalorder %s32, 0
      %p147 = por %p145, %p146
      %p148 = scmp.ne.s32.totalorder %s134, %s135
      %p149 = scmp.eq.s32.totalorder %s33, 1
      %p150 = por %p148, %p149
      %p152 = scmp.ne.s32.totalorder %s135, %s151
      %p153 = scmp.eq.s32.totalorder %s33, 0
      %p154 = por %p152, %p153
      %s155 = ssub.s32 %s34, %s46
      %s156 = ssub.s32 %s35, %s42
      %s157 = sor.u32 %s155, %s156
      %p158 = scmp.eq.s32.totalorder %s157, 0
      %s160 = sadd.s32 %s159, 1
      %s161 = scalar_select %p158, %s159, %s160
      %p164 = pneg %p158
      %p165 = scmp.eq.s32.totalorder %s27, 1
      %p166 = por %p164, %p165
      %p167 = scmp.ne.s32.totalorder %s159, %s162
      %p168 = scmp.eq.s32.totalorder %s27, 0
      %p169 = por %p167, %p168
      %p170 = scmp.ne.s32.totalorder %s159, %s162
      %p171 = scmp.eq.s32.totalorder %s32, 1
      %p172 = por %p170, %p171
      %p173 = scmp.ne.s32.totalorder %s162, %s163
      %p174 = scmp.eq.s32.totalorder %s32, 0
      %p175 = por %p173, %p174
      %p176 = scmp.ne.s32.totalorder %s162, %s163
      %p177 = scmp.eq.s32.totalorder %s33, 1
      %p178 = por %p176, %p177
      %p180 = scmp.ne.s32.totalorder %s163, %s179
      %p181 = scmp.eq.s32.totalorder %s33, 0
      %p182 = por %p180, %p181
      %s183 = ssub.s32 %s34, %s46
      %s184 = ssub.s32 %s35, %s42
      %s185 = sor.u32 %s183, %s184
      %p186 = scmp.eq.s32.totalorder %s185, 0
      %s188 = sadd.s32 %s187, 1
      %s189 = scalar_select %p186, %s187, %s188
      %p192 = pneg %p186
      %p193 = scmp.eq.s32.totalorder %s27, 1
      %p194 = por %p192, %p193
      %p195 = scmp.ne.s32.totalorder %s187, %s190
      %p196 = scmp.eq.s32.totalorder %s27, 0
      %p197 = por %p195, %p196
      %p198 = scmp.ne.s32.totalorder %s187, %s190
      %p199 = scmp.eq.s32.totalorder %s32, 1
      %p200 = por %p198, %p199
      %p201 = scmp.ne.s32.totalorder %s190, %s191
      %p202 = scmp.eq.s32.totalorder %s32, 0
      %p203 = por %p201, %p202
      %p204 = scmp.ne.s32.totalorder %s190, %s191
      %p205 = scmp.eq.s32.totalorder %s33, 1
      %p206 = por %p204, %p205
      %p208 = scmp.ne.s32.totalorder %s191, %s207
      %p209 = scmp.eq.s32.totalorder %s33, 0
      %p210 = por %p208, %p209
      %p211 = scmp.le.s32.totalorder 1, %s27
      %p212 = scmp.lt.s32.totalorder %s27, 3
      %p213 = pnand %p211, %p212
      %p214 = pneg %p213
      // Predicated region
      $region9: #{tpu_custom_call.1} parent=5 // pred_check
        _
      $region10: #{tpu_custom_call.1} parent=5 // pred_check_branch
        %216 = sbr.rel (%p213) target = $region12
      $region11: #{tpu_custom_call.1} parent=5 // pred_region
        %s217 = ssub.s32 %s27, 1
      $region12: #{tpu_custom_call.1} parent=5 // pred_fallthru
        _
      %p218 = scmp.lt.s32.totalorder %s27, 2
      // Predicated region
      $region13: #{tpu_custom_call.1} parent=5 // pred_check
        %p219 = pneg %p218
      $region14: #{tpu_custom_call.1} parent=5 // pred_check_branch
        %221 = sbr.rel (%p219) target = $region16
      $region15: #{tpu_custom_call.1} parent=5 // pred_region
        // Predicated region
        $region17: #{tpu_custom_call.1} parent=15 // pred_check
          %p222 = pneg %p61
        $region18: #{tpu_custom_call.1} parent=15 // pred_check_branch
          %224 = sbr.rel (%p222) target = $region20
        $region19: #{tpu_custom_call.1} parent=15 // pred_region
          %s225 = sand.u32 %s51, 1
          %s226 = scalar_lea.sflag [#allocation3], %s225
          %s227 = sand.u32 %s51, 1
          %s228 = smul.addr %s227, 8
          %s229 = scalar_lea.vmem [#allocation2], %s228
          %231 = vsyncadd %s226, 0
          %s232 = sadd.s32 %s35, %s34
          %s233 = smul.addr %s232, 8
          %s234 = scalar_lea.hbm %s0, %s233
          %s236 = sshll.u32 %s234, 4
          %s237 = int_to_ptr.hbm [resolvable:$true] %s236
          %s238 = sshll.u32 %s229, 4
          %s239 = int_to_ptr.vmem [resolvable:$true] %s238
          %241 = dma.hbm_to_vmem [thread:$0]  %s237, 128, %s239, %s226
        $region20: #{tpu_custom_call.1} parent=15 // pred_fallthru
          _
        // Predicated region
        $region21: #{tpu_custom_call.1} parent=15 // pred_check
          %p242 = pneg %p87
        $region22: #{tpu_custom_call.1} parent=15 // pred_check_branch
          %244 = sbr.rel (%p242) target = $region24
        $region23: #{tpu_custom_call.1} parent=15 // pred_region
          %s245 = sand.u32 %s27, 1
          %s246 = scalar_lea.sflag [#allocation6], %s245
          %s247 = sand.u32 %s77, 1
          %s248 = smul.addr %s247, 8
          %s249 = scalar_lea.vmem [#allocation5], %s248
          %251 = vsyncadd %s246, 0
          %s252 = smul.addr %s34, 8
          %s253 = scalar_lea.hbm %s1, %s252
          %s255 = sshll.u32 %s253, 4
          %s256 = int_to_ptr.hbm [resolvable:$true] %s255
          %s257 = sshll.u32 %s249, 4
          %s258 = int_to_ptr.vmem [resolvable:$true] %s257
          %260 = dma.hbm_to_vmem [thread:$0]  %s256, 128, %s258, %s246
        $region24: #{tpu_custom_call.1} parent=15 // pred_fallthru
          _
        // Predicated region
        $region25: #{tpu_custom_call.1} parent=15 // pred_check
          %p261 = pneg %p113
        $region26: #{tpu_custom_call.1} parent=15 // pred_check_branch
          %263 = sbr.rel (%p261) target = $region28
        $region27: #{tpu_custom_call.1} parent=15 // pred_region
          %s264 = sand.u32 %s27, 1
          %s265 = scalar_lea.sflag [#allocation6], %s264
          %s266 = sand.u32 %s103, 1
          %s267 = smul.addr %s266, 8
          %s268 = scalar_lea.vmem [#allocation7], %s267
          %270 = vsyncadd %s265, 0
          %s271 = smul.addr %s34, 8
          %s272 = scalar_lea.hbm %s2, %s271
          %s274 = sshll.u32 %s272, 4
          %s275 = int_to_ptr.hbm [resolvable:$true] %s274
          %s276 = sshll.u32 %s268, 4
          %s277 = int_to_ptr.vmem [resolvable:$true] %s276
          %279 = dma.hbm_to_vmem [thread:$0]  %s275, 128, %s277, %s265
        $region28: #{tpu_custom_call.1} parent=15 // pred_fallthru
          _
        // Predicated region
        $region29: #{tpu_custom_call.1} parent=15 // pred_check
          %p280 = pneg %p141
        $region30: #{tpu_custom_call.1} parent=15 // pred_check_branch
          %282 = sbr.rel (%p280) target = $region32
        $region31: #{tpu_custom_call.1} parent=15 // pred_region
          %s283 = sand.u32 %s131, 1
          %s284 = scalar_lea.sflag [#allocation9], %s283
          %s285 = sand.u32 %s131, 1
          %s286 = smul.addr %s285, 4
          %s287 = scalar_lea.vmem [#allocation8], %s286
          %289 = vsyncadd %s284, 0
          %s290 = sadd.s32 %s35, %s34
          %s291 = smul.addr %s290, 4
          %s292 = scalar_lea.hbm %s3, %s291
          %s294 = sshll.u32 %s292, 4
          %s295 = int_to_ptr.hbm [resolvable:$true] %s294
          %s296 = sshll.u32 %s287, 4
          %s297 = int_to_ptr.vmem [resolvable:$true] %s296
          %299 = dma.hbm_to_vmem [thread:$0]  %s295, 64, %s297, %s284
        $region32: #{tpu_custom_call.1} parent=15 // pred_fallthru
          _
      $region16: #{tpu_custom_call.1} parent=5 // pred_fallthru
        _
      %p300 = scmp.le.s32.totalorder 1, %s27
      %p301 = scmp.lt.s32.totalorder %s27, 3
      %p302 = pnand %p300, %p301
      %p303 = pneg %p302
      // Predicated region
      $region33: #{tpu_custom_call.1} parent=5 // pred_check
        _
      $region34: #{tpu_custom_call.1} parent=5 // pred_check_branch
        %305 = sbr.rel (%p302) target = $region36
      $region35: #{tpu_custom_call.1} parent=5 // pred_region
        %s306 = ssub.s32 %s27, 1
        %s307 = sand.u32 %s54, 1
        %s308 = scalar_lea.sflag [#allocation3], %s307
        %s309 = sand.u32 %s54, 1
        %s310 = smul.addr %s309, 8
        %s311 = scalar_lea.vmem [#allocation2], %s310
        // Predicated region
        $region37: #{tpu_custom_call.1} parent=35 // pred_check
          %p312 = pneg %p67
        $region38: #{tpu_custom_call.1} parent=35 // pred_check_branch
          %314 = sbr.rel (%p312) target = $region40
        $region39: #{tpu_custom_call.1} parent=35 // pred_region
          %316 = dma.done %s308, 128
        $region40: #{tpu_custom_call.1} parent=35 // pred_fallthru
          _
        %s317 = sand.u32 %s32, 1
        %s318 = scalar_lea.sflag [#allocation6], %s317
        %s319 = sand.u32 %s80, 1
        %s320 = smul.addr %s319, 8
        %s321 = scalar_lea.vmem [#allocation5], %s320
        // Predicated region
        $region41: #{tpu_custom_call.1} parent=35 // pred_check
          %p322 = pneg %p93
        $region42: #{tpu_custom_call.1} parent=35 // pred_check_branch
          %324 = sbr.rel (%p322) target = $region44
        $region43: #{tpu_custom_call.1} parent=35 // pred_region
          %326 = dma.done %s318, 128
        $region44: #{tpu_custom_call.1} parent=35 // pred_fallthru
          _
        %s327 = sand.u32 %s32, 1
        %s328 = scalar_lea.sflag [#allocation6], %s327
        %s329 = sand.u32 %s106, 1
        %s330 = smul.addr %s329, 8
        %s331 = scalar_lea.vmem [#allocation7], %s330
        // Predicated region
        $region45: #{tpu_custom_call.1} parent=35 // pred_check
          %p332 = pneg %p119
        $region46: #{tpu_custom_call.1} parent=35 // pred_check_branch
          %334 = sbr.rel (%p332) target = $region48
        $region47: #{tpu_custom_call.1} parent=35 // pred_region
          %336 = dma.done %s328, 128
        $region48: #{tpu_custom_call.1} parent=35 // pred_fallthru
          _
        %s337 = sand.u32 %s134, 1
        %s338 = scalar_lea.sflag [#allocation9], %s337
        %s339 = sand.u32 %s134, 1
        %s340 = smul.addr %s339, 4
        %s341 = scalar_lea.vmem [#allocation8], %s340
        // Predicated region
        $region49: #{tpu_custom_call.1} parent=35 // pred_check
          %p342 = pneg %p147
        $region50: #{tpu_custom_call.1} parent=35 // pred_check_branch
          %344 = sbr.rel (%p342) target = $region52
        $region51: #{tpu_custom_call.1} parent=35 // pred_region
          %346 = dma.done %s338, 64
        $region52: #{tpu_custom_call.1} parent=35 // pred_fallthru
          _
        %s347 = sand.u32 %s54, 1
        %s348 = scalar_lea.sflag [#allocation3], %s347
        %s349 = sand.u32 %s54, 1
        %s350 = smul.addr %s349, 8
        %s351 = scalar_lea.vmem [#allocation2], %s350
        %p352 = pneg %p67
        %p353 = pneg %p64
        %s354 = sand.u32 %s32, 1
        %s355 = scalar_lea.sflag [#allocation6], %s354
        %s356 = sand.u32 %s80, 1
        %s357 = smul.addr %s356, 8
        %s358 = scalar_lea.vmem [#allocation5], %s357
        %p359 = pneg %p93
        %p360 = pneg %p90
        %s361 = sand.u32 %s32, 1
        %s362 = scalar_lea.sflag [#allocation6], %s361
        %s363 = sand.u32 %s106, 1
        %s364 = smul.addr %s363, 8
        %s365 = scalar_lea.vmem [#allocation7], %s364
        %p366 = pneg %p119
        %p367 = pneg %p116
        %s368 = sand.u32 %s134, 1
        %s369 = scalar_lea.sflag [#allocation9], %s368
        %s370 = sand.u32 %s134, 1
        %s371 = smul.addr %s370, 4
        %s372 = scalar_lea.vmem [#allocation8], %s371
        %p373 = pneg %p147
        %p374 = pneg %p144
        %p375 = pneg %p175
        %p376 = pneg %p172
        %s377 = sand.u32 %s162, 1
        %s378 = scalar_lea.sflag [#allocation4], %s377
        %s379 = sand.u32 %s162, 1
        %s380 = smul.addr %s379, 8
        %s381 = scalar_lea.vmem [#allocation10], %s380
        %p382 = pneg %p203
        %p383 = pneg %p200
        %s384 = sand.u32 %s190, 1
        %s385 = scalar_lea.sflag [#allocation12], %s384
        %s386 = sand.u32 %s190, 1
        %s387 = smul.addr %s386, 8
        %s388 = scalar_lea.vmem [#allocation11], %s387
        %v389 = vld [vmem:[%s311] sm:$0xff]
        %v390 = vmul.f32 %v389, 0.17677669
        %v391 = vld [vmem:[%s321] sm:$0xff]
        %v392 = vld [vmem:[%s331] sm:$0xff]
        %v393 = vld [vmem:[%s341] sm:$0xf]
        %v394 = vunpack.c.l.bf16 %v393
        %vm395 = vcmp.ne.f32.partialorder %v394, 0.0
        %v396 = vsel %vm395, 0.0, -1e+09
        %vm397 = vcmask 261120
        %v399 = vsel %vm397, %v390, 0
        %v402 = vsel %vm397, %v391, 0
        %404 = vmatpush.xpose.msra.mxu0 0.0
        %405 = vmatpush.xpose.msra.mxu0 0.0
        %406 = vmatpush.xpose.msra.mxu0 0.0
        %407 = vmatpush.xpose.msra.mxu0 0.0
        %408 = vmatpush.xpose.msra.mxu0 0.0
        %409 = vmatpush.xpose.msra.mxu0 0.0
        %410 = vmatpush.xpose.msra.mxu0 0.0
        %411 = vmatpush.xpose.msra.mxu0 0.0
        %412 = vmatpush.xpose.msra.mxu0 0.0
        %413 = vmatpush.xpose.msra.mxu0 0.0
        %414 = vmatpush.xpose.msra.mxu0 0.0
        %415 = vmatpush.xpose.msra.mxu0 0.0
        %416 = vmatpush.xpose.msra.mxu0 0.0
        %417 = vmatpush.xpose.msra.mxu0 0.0
        %418 = vmatpush.xpose.msra.mxu0 0.0
        %419 = vmatpush.xpose.msra.mxu0 %v402
        %420 = vmatmul.f32.gmra.mxu0 %v399
        %v421 = vpop.f32.mrf.mxu0
        %v422 = vadd.f32 %v396, %v421
        %423 = vdwg.mxu0
        %vm424 = vcmask 64512
        %v425 = vsel %vm424, %v422, -inf
        %426 = vmax.xlane.f32.xlu0 %v425
        %v427 = vpop.xlane.xlu0 %426
        %v428 = vsub.f32 %v422, %v427
        %v429 = vmul.f32 %v428, 1.442695
        %v430 = vpow.pop %v429
        %v431 = vsel %vm424, %v430, 0.0
        %432 = vadd.xlane.f32.xlu0 %v431
        %v433 = vpop.xlane.xlu0 %432
        %v434 = vrcp.pop %v433
        %v435 = vmul.f32 %v430, %v434
        %v437 = vsel %vm424, %v435, 0
        %439 = vmatpush.msra.mxu0 0.0
        %440 = vmatpush.msra.mxu0 0.0
        %441 = vmatpush.msra.mxu0 0.0
        %442 = vmatpush.msra.mxu0 0.0
        %443 = vmatpush.msra.mxu0 0.0
        %444 = vmatpush.msra.mxu0 0.0
        %445 = vmatpush.msra.mxu0 0.0
        %446 = vmatpush.msra.mxu0 0.0
        %447 = vmatpush.msra.mxu0 0.0
        %448 = vmatpush.msra.mxu0 0.0
        %449 = vmatpush.msra.mxu0 0.0
        %450 = vmatpush.msra.mxu0 0.0
        %451 = vmatpush.msra.mxu0 0.0
        %452 = vmatpush.msra.mxu0 0.0
        %453 = vmatpush.msra.mxu0 0.0
        %454 = vmatpush.msra.mxu0 %v392
        %455 = vmatmul.f32.gmra.mxu0 %v437
        %v456 = vpop.f32.mrf.mxu0
        %v457 = vadd.f32 0.0, %v456
        %458 = vdwg.mxu0
        %459 = vst.msk [vmem:[%s388] sm:$0xff] %vm424, %v435
        %460 = vst.msk [vmem:[%s381] sm:$0xff] %vm397, %v457
        %s461 = sand.u32 %s162, 1
        %s462 = scalar_lea.sflag [#allocation4], %s461
        %s463 = sand.u32 %s162, 1
        %s464 = smul.addr %s463, 8
        %s465 = scalar_lea.vmem [#allocation10], %s464
        %s466 = sand.u32 %s190, 1
        %s467 = scalar_lea.sflag [#allocation12], %s466
        %s468 = sand.u32 %s190, 1
        %s469 = smul.addr %s468, 8
        %s470 = scalar_lea.vmem [#allocation11], %s469
        // Predicated region
        $region53: #{tpu_custom_call.1} parent=35 // pred_check
          %p471 = pneg %p172
        $region54: #{tpu_custom_call.1} parent=35 // pred_check_branch
          %473 = sbr.rel (%p471) target = $region56
        $region55: #{tpu_custom_call.1} parent=35 // pred_region
          %475 = vsyncadd %s462, 0
          %s476 = sadd.s32 %s37, %s36
          %s477 = smul.addr %s476, 8
          %s478 = scalar_lea.hbm %s4, %s477
          %s480 = sshll.u32 %s465, 4
          %s481 = int_to_ptr.vmem [resolvable:$true] %s480
          %s482 = sshll.u32 %s478, 4
          %s483 = int_to_ptr.hbm [resolvable:$true] %s482
          %485 = dma.vmem_to_hbm [thread:$0]  %s481, 128, %s483, %s462
        $region56: #{tpu_custom_call.1} parent=35 // pred_fallthru
          _
        // Predicated region
        $region57: #{tpu_custom_call.1} parent=35 // pred_check
          %p486 = pneg %p200
        $region58: #{tpu_custom_call.1} parent=35 // pred_check_branch
          %488 = sbr.rel (%p486) target = $region60
        $region59: #{tpu_custom_call.1} parent=35 // pred_region
          %490 = vsyncadd %s467, 0
          %s491 = sadd.s32 %s37, %s36
          %s492 = smul.addr %s491, 8
          %s493 = scalar_lea.hbm %s5, %s492
          %s495 = sshll.u32 %s470, 4
          %s496 = int_to_ptr.vmem [resolvable:$true] %s495
          %s497 = sshll.u32 %s493, 4
          %s498 = int_to_ptr.hbm [resolvable:$true] %s497
          %500 = dma.vmem_to_hbm [thread:$0]  %s496, 128, %s498, %s467
        $region60: #{tpu_custom_call.1} parent=35 // pred_fallthru
          _
      $region36: #{tpu_custom_call.1} parent=5 // pred_fallthru
        _
      %p501 = scmp.le.s32.totalorder 2, %s27
      // Predicated region
      $region61: #{tpu_custom_call.1} parent=5 // pred_check
        %p502 = pneg %p501
      $region62: #{tpu_custom_call.1} parent=5 // pred_check_branch
        %504 = sbr.rel (%p502) target = $region64
      $region63: #{tpu_custom_call.1} parent=5 // pred_region
        %s505 = ssub.s32 %s27, 2
        // Predicated region
        $region65: #{tpu_custom_call.1} parent=63 // pred_check
          %p506 = pneg %p178
        $region66: #{tpu_custom_call.1} parent=63 // pred_check_branch
          %508 = sbr.rel (%p506) target = $region68
        $region67: #{tpu_custom_call.1} parent=63 // pred_region
          %s509 = sand.u32 %s163, 1
          %s510 = scalar_lea.sflag [#allocation4], %s509
          %s511 = sand.u32 %s163, 1
          %s512 = smul.addr %s511, 8
          %s513 = scalar_lea.vmem [#allocation10], %s512
          %515 = dma.done %s510, 128
        $region68: #{tpu_custom_call.1} parent=63 // pred_fallthru
          _
        // Predicated region
        $region69: #{tpu_custom_call.1} parent=63 // pred_check
          %p516 = pneg %p206
        $region70: #{tpu_custom_call.1} parent=63 // pred_check_branch
          %518 = sbr.rel (%p516) target = $region72
        $region71: #{tpu_custom_call.1} parent=63 // pred_region
          %s519 = sand.u32 %s191, 1
          %s520 = scalar_lea.sflag [#allocation12], %s519
          %s521 = sand.u32 %s191, 1
          %s522 = smul.addr %s521, 8
          %s523 = scalar_lea.vmem [#allocation11], %s522
          %525 = dma.done %s520, 128
        $region72: #{tpu_custom_call.1} parent=63 // pred_fallthru
          _
      $region64: #{tpu_custom_call.1} parent=5 // pred_fallthru
        _
    $region6: #{tpu_custom_call.1} parent=1 // loop_footer
      %s31 = sadd.s32 1, %s27
    $region7: #{tpu_custom_call.1} parent=1 // loop_footer_branch
      %26 = sbr.rel target = $region3
    $region8: #{tpu_custom_call.1} parent=1 // loop_exit
      _
    %526 = vsyncpa [#allocation3], 1
    %s527 = scalar_lea.sflag [#allocation3], 1
    %528 = vsyncpa %s527, 1
    %529 = vsyncpa [#allocation6], 1
    %s530 = scalar_lea.sflag [#allocation6], 1
    %531 = vsyncpa %s530, 1
    %532 = vsyncpa [#allocation9], 1
    %s533 = scalar_lea.sflag [#allocation9], 1
    %534 = vsyncpa %s533, 1
    %535 = vsyncpa [#allocation4], 1
    %s536 = scalar_lea.sflag [#allocation4], 1
    %537 = vsyncpa %s536, 1
    %538 = vsyncpa [#allocation12], 1
    %s539 = scalar_lea.sflag [#allocation12], 1
    %540 = vsyncpa %s539, 1

</llo_original>
